<compile_context>
chip_gen: v6e
topology: v6e:2x2x1
jax: 0.10.0
libtpu: 0.0.40
codegen_flags: <defaults>
</compile_context>

<pallas_src>
import functools

import jax
import jax.numpy as jnp
from jax.experimental import pallas as pl
from jax.experimental.pallas import tpu as pltpu

EPS = 1e-5          # GraphNorm eps
PAD_C = 128         # all channel dims padded to one lane-dense width
POOL_ROWS = 8       # pooled / output rows padded to one f32 sublane tile (G <= 8)

# f32 param-slab row layout (each layer's vectors get their own 8-sublane tile)
P_ROWS = 40
HEAD_WX_ROW = 24    # Linear weight over the 128 pooled features
HEAD_WU_ROW = 25    # [Linear weight over u | bias | 0 ...]
U_OFF = 32          # rows 32..39: u padded to 8 rows; ones-lane carries bias


# ----------------------------- Pallas kernel -------------------------------
def _gnn_kernel(m_ref, p_ref, out_ref, *, n, w_off):
    """Single-invocation kernel; every operand lives in VMEM.

    m_ref  [w_off + 3*128, 128] bf16:
        rows [0, n)              node features x (zero-padded lanes)
        rows [n, 2n)             A_hat, lanes [0, n)
        rows [2n, 2n+8)          mean-pool matrix, lanes [0, n), rows >= G zero
        rows [w_off + 128*l ...) GCN weight W_l zero-padded to [128, 128]
    p_ref  [40, 128] f32:
        rows 8l..8l+3            b, gamma, beta, alpha of layer l (pads are 0)
        row 24                   head weight over pooled features
        row 25                   [head weight over u | bias | 0 ...]
        rows 32..39              u padded to 8 rows (ones-lane = bias carrier)
    out_ref [8, 128] f32: per-graph head products; lane-sum done by caller.
    """
    a = m_ref[n:2 * n, :n]                         # bf16 [n, n]
    pool = m_ref[2 * n:2 * n + POOL_ROWS, :n]      # bf16 [8, n]
    h = m_ref[0:n, :]                              # bf16 [n, 128]

    # Static unroll (3 iterations).  W_l is loaded right before its matmul to
    # bound its live range; if a bundle dump ever shows all three weight loads
    # hoisted / spilling, switch this to lax.fori_loop with a pl.ds index.
    for l in range(3):
        b     = p_ref[8 * l + 0:8 * l + 1, :]
        gamma = p_ref[8 * l + 1:8 * l + 2, :]
        beta  = p_ref[8 * l + 2:8 * l + 3, :]
        alpha = p_ref[8 * l + 3:8 * l + 4, :]
        w = m_ref[w_off + 128 * l:w_off + 128 * (l + 1), :].astype(jnp.float32)

        # GCNConv reordered as (A_hat @ h) @ W; agg stays f32 into the weight
        # matmul (its bf16 cast was the lossiest step of the old version).
        agg = jnp.dot(a, h, preferred_element_type=jnp.float32)        # [n,128]
        z = jnp.dot(agg, w, preferred_element_type=jnp.float32) + b    # [n,128]

        # GraphNorm (module calls it with batch=None -> stats over ALL nodes).
        mean = jnp.mean(z, axis=0, keepdims=True)
        shifted = z - alpha * mean
        var = jnp.mean(shifted * shifted, axis=0, keepdims=True)
        zn = gamma * shifted * jax.lax.rsqrt(var + EPS) + beta

        # ReLU, then bf16 for the next aggregation matmul.  Padded lanes stay
        # exactly zero because the b/gamma/beta pads are zero (packing invariant).
        h = jnp.maximum(zn, 0.0).astype(jnp.bfloat16)

    # global_mean_pool as a dense [8, n] @ [n, 128] matmul (f32 accumulate).
    pooled = jnp.dot(pool, h, preferred_element_type=jnp.float32)      # [8,128]

    # Final Linear on cat([pooled, u]) as element-wise products; the cross-lane
    # sum happens in the jitted wrapper so the output store stays lane-dense.
    u_aug = p_ref[U_OFF:U_OFF + POOL_ROWS, :]                          # [8,128]
    out_ref[...] = (pooled * p_ref[HEAD_WX_ROW:HEAD_WX_ROW + 1, :]
                    + u_aug * p_ref[HEAD_WU_ROW:HEAD_WU_ROW + 1, :])


# ------------------------------ host-side glue ------------------------------
def build_gcn_adj(edge_index, num_nodes):
    """Dense A_hat = D^-1/2 (A + I) D^-1/2, in-degree incl. self loop."""
    src, dst = edge_index[0], edge_index[1]
    a = jnp.zeros((num_nodes, num_nodes), jnp.float32)
    a = a.at[dst, src].add(1.0)                      # A[i, j]: edge j -> i
    a = a + jnp.eye(num_nodes, dtype=jnp.float32)    # add self loops
    deg = jnp.sum(a, axis=1)
    dinv = jax.lax.rsqrt(deg)
    return dinv[:, None] * a * dinv[None, :]


def build_pool_matrix(batch, num_graphs):
    one_hot = (batch[None, :] == jnp.arange(num_graphs)[:, None]).astype(jnp.float32)
    counts = jnp.maximum(one_hot.sum(axis=1, keepdims=True), 1.0)
    return one_hot / counts  # [G, N]


def pack_data_slab(x, a_hat, pool_mat, params, in_channels):
    """One bf16 slab: x rows, A_hat rows, pool rows, then the 3 GCN weights."""
    n = x.shape[0]
    g = pool_mat.shape[0]
    w_off = -(-(2 * n + POOL_ROWS) // 16) * 16   # align W block to bf16 sublane tile
    m = jnp.zeros((w_off + 3 * PAD_C, PAD_C), jnp.float32)
    m = m.at[:n, :in_channels].set(x)
    m = m.at[n:2 * n, :n].set(a_hat)
    m = m.at[2 * n:2 * n + g, :n].set(pool_mat)
    for l, w in enumerate((params[0], params[5], params[10])):
        m = m.at[w_off + 128 * l:w_off + 128 * l + w.shape[0], :w.shape[1]].set(w)
    return m.astype(jnp.bfloat16), w_off


def pack_param_slab(params, u, global_features):
    """One f32 slab with all per-layer vectors, head weights/bias and u.

    Invariant: padded lanes of b / gamma / beta (and alpha) MUST remain exactly
    zero so zero-padded feature lanes survive GraphNorm (rsqrt(1e-5)~316 would
    otherwise amplify any nonzero pad into lanes 32..127).
    """
    (_, b1, g1, be1, al1,
     _, b2, g2, be2, al2,
     _, b3, g3, be3, al3,
     wlx, wlu, bl) = params
    g = u.shape[0]
    p = jnp.zeros((P_ROWS, PAD_C), jnp.float32)
    for l, (b, ga, be, al) in enumerate(
            [(b1, g1, be1, al1), (b2, g2, be2, al2), (b3, g3, be3, al3)]):
        c = b.shape[1]
        p = p.at[8 * l + 0, :c].set(b[0])
        p = p.at[8 * l + 1, :c].set(ga[0])
        p = p.at[8 * l + 2, :c].set(be[0])
        p = p.at[8 * l + 3, :c].set(al[0])
    p = p.at[HEAD_WX_ROW, :wlx.shape[0]].set(wlx[:, 0])
    p = p.at[HEAD_WU_ROW, :global_features].set(wlu[:, 0])
    p = p.at[HEAD_WU_ROW, global_features].set(bl[0, 0])
    p = p.at[U_OFF:U_OFF + g, :global_features].set(u)
    p = p.at[U_OFF:U_OFF + g, global_features].set(1.0)   # bias lane (real graphs only)
    return p


@jax.jit
def simple_gnn_forward(x, edge_index, batch, u, params):
    """Whole forward (packing + Pallas kernel + head reduction) under one jit."""
    n, in_ch = x.shape
    g, gf = u.shape
    assert n <= PAD_C and in_ch <= PAD_C, "node/feature count must fit one lane tile"
    assert g <= POOL_ROWS and gf + 1 <= PAD_C, "graph/global count exceeds padding"

    a_hat = build_gcn_adj(edge_index, n)
    pool_mat = build_pool_matrix(batch, g)
    m_slab, w_off = pack_data_slab(x, a_hat, pool_mat, params, in_ch)
    p_slab = pack_param_slab(params, u, gf)

    flops = (3 * (2 * n * n * PAD_C + 2 * n * PAD_C * PAD_C)
             + 2 * POOL_ROWS * n * PAD_C + 3 * POOL_ROWS * PAD_C)
    bytes_accessed = int(m_slab.size) * 2 + int(p_slab.size) * 4 + POOL_ROWS * PAD_C * 4

    head = pl.pallas_call(
        functools.partial(_gnn_kernel, n=n, w_off=w_off),
        out_shape=jax.ShapeDtypeStruct((POOL_ROWS, PAD_C), jnp.float32),
        in_specs=[pl.BlockSpec(memory_space=pltpu.MemorySpace.VMEM)] * 2,
        out_specs=pl.BlockSpec(memory_space=pltpu.MemorySpace.VMEM),
        compiler_params=pltpu.CompilerParams(vmem_limit_bytes=32 * 1024 * 1024),
        cost_estimate=pl.CostEstimate(flops=flops, transcendentals=3 * PAD_C,
                                      bytes_accessed=bytes_accessed),
    )(m_slab, p_slab)

    # Lane-sum + graph slice done here so the kernel's store is (8,128)-dense.
    return jnp.sum(head, axis=-1, keepdims=True)[:g]


# ------------------------------ parameters ----------------------------------
def init_params(key, in_channels=14, global_features=3):
    """True-shape parameters (what the PyTorch module would hold)."""
    dims = [(in_channels, 32), (32, 64), (64, 128)]
    keys = jax.random.split(key, 16)
    ki = 0
    params = []
    for cin, cout in dims:
        w = jax.random.normal(keys[ki], (cin, cout), jnp.float32) / jnp.sqrt(float(cin)); ki += 1
        b = 0.1 * jax.random.normal(keys[ki], (1, cout), jnp.float32); ki += 1
        gamma = 1.0 + 0.1 * jax.random.normal(keys[ki], (1, cout), jnp.float32); ki += 1
        beta = 0.1 * jax.random.normal(keys[ki], (1, cout), jnp.float32); ki += 1
        alpha = jnp.ones((1, cout), jnp.float32)     # GraphNorm mean_scale init
        params += [w, b, gamma, beta, alpha]
    fan_in = 128 + global_features
    wlx = jax.random.normal(keys[ki], (128, 1), jnp.float32) / jnp.sqrt(float(fan_in)); ki += 1
    wlu = jax.random.normal(keys[ki], (global_features, 1), jnp.float32) / jnp.sqrt(float(fan_in)); ki += 1
    bl = 0.1 * jnp.ones((1, 1), jnp.float32)
    params += [wlx, wlu, bl]
    return tuple(params)


def reference_forward(x, a_hat, pool_mat, u, params):
    """Pure-JAX f32 reference mirroring the PyTorch forward semantics."""
    (w1, b1, g1, be1, al1,
     w2, b2, g2, be2, al2,
     w3, b3, g3, be3, al3,
     wlx, wlu, bl) = params

    def block(h, w, b, gamma, beta, alpha):
        h = a_hat @ (h @ w) + b
        mean = jnp.mean(h, axis=0, keepdims=True)
        shifted = h - alpha * mean
        var = jnp.mean(shifted * shifted, axis=0, keepdims=True)
        h = gamma * shifted / jnp.sqrt(var + EPS) + beta
        return jnp.maximum(h, 0.0)

    h = block(x, w1, b1, g1, be1, al1)
    h = block(h, w2, b2, g2, be2, al2)
    h = block(h, w3, b3, g3, be3, al3)
    pooled = pool_mat @ h
    return pooled @ wlx + u @ wlu + bl


# ------------------------------- main ----------------------------------------
if __name__ == "__main__":
    N, G = 32, 2                  # 32 nodes, 2 graphs
    IN_CH, GLOBAL_F = 14, 3
    E = 64                        # number of directed edges

    key = jax.random.PRNGKey(0)
    k_x, k_u, k_src, k_off, k_p = jax.random.split(key, 5)

    x = jax.random.normal(k_x, (N, IN_CH), jnp.float32)
    u = jax.random.normal(k_u, (G, GLOBAL_F), jnp.float32)
    src = jax.random.randint(k_src, (E,), 0, N)
    off = jax.random.randint(k_off, (E,), 1, N)
    dst = (src + off) % N         # no self loops (added inside GCN norm)
    edge_index = jnp.stack([src, dst])                            # [2, E]
    batch = jnp.repeat(jnp.arange(G, dtype=jnp.int32), N // G)    # [N]

    params = init_params(k_p, IN_CH, GLOBAL_F)

    out = jax.block_until_ready(
        simple_gnn_forward(x, edge_index, batch, u, params))

    a_hat = build_gcn_adj(edge_index, N)
    pool_mat = build_pool_matrix(batch, G)
    ref = reference_forward(x, a_hat, pool_mat, u, params)

    assert out.shape == (G, 1) and out.dtype == jnp.float32
    # Tolerance loosened (vs 1e-4) because A_hat / activations / weights run in
    # bf16 on the MXU (f32 accumulation); the f32 reference differs by ~bf16
    # mantissa error compounded over three GraphNorm layers.
    if not bool(jnp.allclose(out, ref, atol=3e-2, rtol=3e-2)):
        raise AssertionError(
            f"Mismatch: pallas={out} ref={ref} "
            f"max_abs_diff={jnp.max(jnp.abs(out - ref))}")
    print("KERNEL_OK")
</pallas_src>

<mosaic_0001>
module attributes {stable_mosaic.version = 11 : i64} {
  func.func private @main(%arg0: i32) attributes {dimension_semantics = [#tpu.dimension_semantics<core_parallel>], iteration_bounds = array<i64: 2>, tpu.core_type = #tpu.core_type<sc_scalar_subcore>, window_params = []} {
    return
  }
}

module attributes {stable_mosaic.version = 11 : i64} {
  func.func private @main(%arg0: i32) attributes {dimension_semantics = [#tpu.dimension_semantics<core_parallel>], iteration_bounds = array<i64: 2>, tpu.core_type = #tpu.core_type<sc_scalar_subcore>, window_params = []} {
    return
  }
}

module attributes {stable_mosaic.version = 11 : i64} {
  func.func @_gnn_kernel(%arg0: memref<464x128xbf16, #tpu.memory_space<vmem>>, %arg1: memref<40x128xf32, #tpu.memory_space<vmem>>, %arg2: memref<8x128xf32, #tpu.memory_space<vmem>>) attributes {dimension_semantics = [], scalar_prefetch = 0 : i64, scratch_operands = 0 : i64, tpu.core_type = #tpu.core_type<tc>} {
    %c32 = arith.constant 32 : index
    %c0 = arith.constant 0 : index
    %0 = vector.load %arg0[%c32, %c0] : memref<464x128xbf16, #tpu.memory_space<vmem>>, vector<32x32xbf16>
    %c64 = arith.constant 64 : index
    %c0_0 = arith.constant 0 : index
    %1 = vector.load %arg0[%c64, %c0_0] : memref<464x128xbf16, #tpu.memory_space<vmem>>, vector<8x32xbf16>
    %c0_1 = arith.constant 0 : index
    %c0_2 = arith.constant 0 : index
    %2 = vector.load %arg0[%c0_1, %c0_2] : memref<464x128xbf16, #tpu.memory_space<vmem>>, vector<32x128xbf16>
    %c0_3 = arith.constant 0 : index
    %c0_4 = arith.constant 0 : index
    %3 = vector.load %arg1[%c0_3, %c0_4] : memref<40x128xf32, #tpu.memory_space<vmem>>, vector<1x128xf32>
    %c1 = arith.constant 1 : index
    %c0_5 = arith.constant 0 : index
    %4 = vector.load %arg1[%c1, %c0_5] : memref<40x128xf32, #tpu.memory_space<vmem>>, vector<1x128xf32>
    %c2 = arith.constant 2 : index
    %c0_6 = arith.constant 0 : index
    %5 = vector.load %arg1[%c2, %c0_6] : memref<40x128xf32, #tpu.memory_space<vmem>>, vector<1x128xf32>
    %c3 = arith.constant 3 : index
    %c0_7 = arith.constant 0 : index
    %6 = vector.load %arg1[%c3, %c0_7] : memref<40x128xf32, #tpu.memory_space<vmem>>, vector<1x128xf32>
    %c80 = arith.constant 80 : index
    %c0_8 = arith.constant 0 : index
    %7 = vector.load %arg0[%c80, %c0_8] : memref<464x128xbf16, #tpu.memory_space<vmem>>, vector<128x128xbf16>
    %8 = arith.extf %7 : vector<128x128xbf16> to vector<128x128xf32>
    %cst = arith.constant dense<0.000000e+00> : vector<32x128xf32>
    %9 = tpu.matmul %0, %2, %cst {dimension_numbers = #tpu.dot_dimension_numbers<[1], [0], [0], [1], [0, 0, 1, 1], [], []>} : vector<32x32xbf16>, vector<32x128xbf16>, vector<32x128xf32> -> vector<32x128xf32>
    %cst_9 = arith.constant dense<0.000000e+00> : vector<32x128xf32>
    %10 = tpu.matmul %9, %8, %cst_9 {dimension_numbers = #tpu.dot_dimension_numbers<[1], [0], [0], [1], [0, 0, 1, 1], [], []>} : vector<32x128xf32>, vector<128x128xf32>, vector<32x128xf32> -> vector<32x128xf32>
    %11 = vector.broadcast %3 : vector<1x128xf32> to vector<32x128xf32>
    %12 = arith.addf %10, %11 : vector<32x128xf32>
    %cst_10 = arith.constant dense<0.000000e+00> : vector<128xf32>
    %13 = vector.multi_reduction <add>, %12, %cst_10 [0] : vector<32x128xf32> to vector<128xf32>
    %14 = vector.shape_cast %13 : vector<128xf32> to vector<1x128xf32>
    %cst_11 = arith.constant 3.200000e+01 : f32
    %15 = vector.broadcast %cst_11 : f32 to vector<1x128xf32>
    %16 = arith.divf %14, %15 : vector<1x128xf32>
    %17 = arith.mulf %6, %16 : vector<1x128xf32>
    %18 = vector.broadcast %17 : vector<1x128xf32> to vector<32x128xf32>
    %19 = arith.subf %12, %18 : vector<32x128xf32>
    %20 = arith.mulf %19, %19 : vector<32x128xf32>
    %cst_12 = arith.constant dense<0.000000e+00> : vector<128xf32>
    %21 = vector.multi_reduction <add>, %20, %cst_12 [0] : vector<32x128xf32> to vector<128xf32>
    %22 = vector.shape_cast %21 : vector<128xf32> to vector<1x128xf32>
    %cst_13 = arith.constant 3.200000e+01 : f32
    %23 = vector.broadcast %cst_13 : f32 to vector<1x128xf32>
    %24 = arith.divf %22, %23 : vector<1x128xf32>
    %25 = vector.broadcast %4 : vector<1x128xf32> to vector<32x128xf32>
    %26 = arith.mulf %25, %19 : vector<32x128xf32>
    %cst_14 = arith.constant 9.99999974E-6 : f32
    %27 = vector.broadcast %cst_14 : f32 to vector<1x128xf32>
    %28 = arith.addf %24, %27 : vector<1x128xf32>
    %29 = math.rsqrt %28 : vector<1x128xf32>
    %30 = vector.broadcast %29 : vector<1x128xf32> to vector<32x128xf32>
    %31 = arith.mulf %26, %30 : vector<32x128xf32>
    %32 = vector.broadcast %5 : vector<1x128xf32> to vector<32x128xf32>
    %33 = arith.addf %31, %32 : vector<32x128xf32>
    %cst_15 = arith.constant 0.000000e+00 : f32
    %34 = vector.broadcast %cst_15 : f32 to vector<32x128xf32>
    %35 = arith.maximumf %33, %34 : vector<32x128xf32>
    %36 = arith.truncf %35 : vector<32x128xf32> to vector<32x128xbf16>
    %c8 = arith.constant 8 : index
    %c0_16 = arith.constant 0 : index
    %37 = vector.load %arg1[%c8, %c0_16] : memref<40x128xf32, #tpu.memory_space<vmem>>, vector<1x128xf32>
    %c9 = arith.constant 9 : index
    %c0_17 = arith.constant 0 : index
    %38 = vector.load %arg1[%c9, %c0_17] : memref<40x128xf32, #tpu.memory_space<vmem>>, vector<1x128xf32>
    %c10 = arith.constant 10 : index
    %c0_18 = arith.constant 0 : index
    %39 = vector.load %arg1[%c10, %c0_18] : memref<40x128xf32, #tpu.memory_space<vmem>>, vector<1x128xf32>
    %c11 = arith.constant 11 : index
    %c0_19 = arith.constant 0 : index
    %40 = vector.load %arg1[%c11, %c0_19] : memref<40x128xf32, #tpu.memory_space<vmem>>, vector<1x128xf32>
    %c208 = arith.constant 208 : index
    %c0_20 = arith.constant 0 : index
    %41 = vector.load %arg0[%c208, %c0_20] : memref<464x128xbf16, #tpu.memory_space<vmem>>, vector<128x128xbf16>
    %42 = arith.extf %41 : vector<128x128xbf16> to vector<128x128xf32>
    %cst_21 = arith.constant dense<0.000000e+00> : vector<32x128xf32>
    %43 = tpu.matmul %0, %36, %cst_21 {dimension_numbers = #tpu.dot_dimension_numbers<[1], [0], [0], [1], [0, 0, 1, 1], [], []>} : vector<32x32xbf16>, vector<32x128xbf16>, vector<32x128xf32> -> vector<32x128xf32>
    %cst_22 = arith.constant dense<0.000000e+00> : vector<32x128xf32>
    %44 = tpu.matmul %43, %42, %cst_22 {dimension_numbers = #tpu.dot_dimension_numbers<[1], [0], [0], [1], [0, 0, 1, 1], [], []>} : vector<32x128xf32>, vector<128x128xf32>, vector<32x128xf32> -> vector<32x128xf32>
    %45 = vector.broadcast %37 : vector<1x128xf32> to vector<32x128xf32>
    %46 = arith.addf %44, %45 : vector<32x128xf32>
    %cst_23 = arith.constant dense<0.000000e+00> : vector<128xf32>
    %47 = vector.multi_reduction <add>, %46, %cst_23 [0] : vector<32x128xf32> to vector<128xf32>
    %48 = vector.shape_cast %47 : vector<128xf32> to vector<1x128xf32>
    %cst_24 = arith.constant 3.200000e+01 : f32
    %49 = vector.broadcast %cst_24 : f32 to vector<1x128xf32>
    %50 = arith.divf %48, %49 : vector<1x128xf32>
    %51 = arith.mulf %40, %50 : vector<1x128xf32>
    %52 = vector.broadcast %51 : vector<1x128xf32> to vector<32x128xf32>
    %53 = arith.subf %46, %52 : vector<32x128xf32>
    %54 = arith.mulf %53, %53 : vector<32x128xf32>
    %cst_25 = arith.constant dense<0.000000e+00> : vector<128xf32>
    %55 = vector.multi_reduction <add>, %54, %cst_25 [0] : vector<32x128xf32> to vector<128xf32>
    %56 = vector.shape_cast %55 : vector<128xf32> to vector<1x128xf32>
    %cst_26 = arith.constant 3.200000e+01 : f32
    %57 = vector.broadcast %cst_26 : f32 to vector<1x128xf32>
    %58 = arith.divf %56, %57 : vector<1x128xf32>
    %59 = vector.broadcast %38 : vector<1x128xf32> to vector<32x128xf32>
    %60 = arith.mulf %59, %53 : vector<32x128xf32>
    %cst_27 = arith.constant 9.99999974E-6 : f32
    %61 = vector.broadcast %cst_27 : f32 to vector<1x128xf32>
    %62 = arith.addf %58, %61 : vector<1x128xf32>
    %63 = math.rsqrt %62 : vector<1x128xf32>
    %64 = vector.broadcast %63 : vector<1x128xf32> to vector<32x128xf32>
    %65 = arith.mulf %60, %64 : vector<32x128xf32>
    %66 = vector.broadcast %39 : vector<1x128xf32> to vector<32x128xf32>
    %67 = arith.addf %65, %66 : vector<32x128xf32>
    %cst_28 = arith.constant 0.000000e+00 : f32
    %68 = vector.broadcast %cst_28 : f32 to vector<32x128xf32>
    %69 = arith.maximumf %67, %68 : vector<32x128xf32>
    %70 = arith.truncf %69 : vector<32x128xf32> to vector<32x128xbf16>
    %c16 = arith.constant 16 : index
    %c0_29 = arith.constant 0 : index
    %71 = vector.load %arg1[%c16, %c0_29] : memref<40x128xf32, #tpu.memory_space<vmem>>, vector<1x128xf32>
    %c17 = arith.constant 17 : index
    %c0_30 = arith.constant 0 : index
    %72 = vector.load %arg1[%c17, %c0_30] : memref<40x128xf32, #tpu.memory_space<vmem>>, vector<1x128xf32>
    %c18 = arith.constant 18 : index
    %c0_31 = arith.constant 0 : index
    %73 = vector.load %arg1[%c18, %c0_31] : memref<40x128xf32, #tpu.memory_space<vmem>>, vector<1x128xf32>
    %c19 = arith.constant 19 : index
    %c0_32 = arith.constant 0 : index
    %74 = vector.load %arg1[%c19, %c0_32] : memref<40x128xf32, #tpu.memory_space<vmem>>, vector<1x128xf32>
    %c336 = arith.constant 336 : index
    %c0_33 = arith.constant 0 : index
    %75 = vector.load %arg0[%c336, %c0_33] : memref<464x128xbf16, #tpu.memory_space<vmem>>, vector<128x128xbf16>
    %76 = arith.extf %75 : vector<128x128xbf16> to vector<128x128xf32>
    %cst_34 = arith.constant dense<0.000000e+00> : vector<32x128xf32>
    %77 = tpu.matmul %0, %70, %cst_34 {dimension_numbers = #tpu.dot_dimension_numbers<[1], [0], [0], [1], [0, 0, 1, 1], [], []>} : vector<32x32xbf16>, vector<32x128xbf16>, vector<32x128xf32> -> vector<32x128xf32>
    %cst_35 = arith.constant dense<0.000000e+00> : vector<32x128xf32>
    %78 = tpu.matmul %77, %76, %cst_35 {dimension_numbers = #tpu.dot_dimension_numbers<[1], [0], [0], [1], [0, 0, 1, 1], [], []>} : vector<32x128xf32>, vector<128x128xf32>, vector<32x128xf32> -> vector<32x128xf32>
    %79 = vector.broadcast %71 : vector<1x128xf32> to vector<32x128xf32>
    %80 = arith.addf %78, %79 : vector<32x128xf32>
    %cst_36 = arith.constant dense<0.000000e+00> : vector<128xf32>
    %81 = vector.multi_reduction <add>, %80, %cst_36 [0] : vector<32x128xf32> to vector<128xf32>
    %82 = vector.shape_cast %81 : vector<128xf32> to vector<1x128xf32>
    %cst_37 = arith.constant 3.200000e+01 : f32
    %83 = vector.broadcast %cst_37 : f32 to vector<1x128xf32>
    %84 = arith.divf %82, %83 : vector<1x128xf32>
    %85 = arith.mulf %74, %84 : vector<1x128xf32>
    %86 = vector.broadcast %85 : vector<1x128xf32> to vector<32x128xf32>
    %87 = arith.subf %80, %86 : vector<32x128xf32>
    %88 = arith.mulf %87, %87 : vector<32x128xf32>
    %cst_38 = arith.constant dense<0.000000e+00> : vector<128xf32>
    %89 = vector.multi_reduction <add>, %88, %cst_38 [0] : vector<32x128xf32> to vector<128xf32>
    %90 = vector.shape_cast %89 : vector<128xf32> to vector<1x128xf32>
    %cst_39 = arith.constant 3.200000e+01 : f32
    %91 = vector.broadcast %cst_39 : f32 to vector<1x128xf32>
    %92 = arith.divf %90, %91 : vector<1x128xf32>
    %93 = vector.broadcast %72 : vector<1x128xf32> to vector<32x128xf32>
    %94 = arith.mulf %93, %87 : vector<32x128xf32>
    %cst_40 = arith.constant 9.99999974E-6 : f32
    %95 = vector.broadcast %cst_40 : f32 to vector<1x128xf32>
    %96 = arith.addf %92, %95 : vector<1x128xf32>
    %97 = math.rsqrt %96 : vector<1x128xf32>
    %98 = vector.broadcast %97 : vector<1x128xf32> to vector<32x128xf32>
    %99 = arith.mulf %94, %98 : vector<32x128xf32>
    %100 = vector.broadcast %73 : vector<1x128xf32> to vector<32x128xf32>
    %101 = arith.addf %99, %100 : vector<32x128xf32>
    %cst_41 = arith.constant 0.000000e+00 : f32
    %102 = vector.broadcast %cst_41 : f32 to vector<32x128xf32>
    %103 = arith.maximumf %101, %102 : vector<32x128xf32>
    %104 = arith.truncf %103 : vector<32x128xf32> to vector<32x128xbf16>
    %cst_42 = arith.constant dense<0.000000e+00> : vector<8x128xf32>
    %105 = tpu.matmul %1, %104, %cst_42 {dimension_numbers = #tpu.dot_dimension_numbers<[1], [0], [0], [1], [0, 0, 1, 1], [], []>} : vector<8x32xbf16>, vector<32x128xbf16>, vector<8x128xf32> -> vector<8x128xf32>
    %c32_43 = arith.constant 32 : index
    %c0_44 = arith.constant 0 : index
    %106 = vector.load %arg1[%c32_43, %c0_44] : memref<40x128xf32, #tpu.memory_space<vmem>>, vector<8x128xf32>
    %c24 = arith.constant 24 : index
    %c0_45 = arith.constant 0 : index
    %107 = vector.load %arg1[%c24, %c0_45] : memref<40x128xf32, #tpu.memory_space<vmem>>, vector<1x128xf32>
    %108 = vector.broadcast %107 : vector<1x128xf32> to vector<8x128xf32>
    %109 = arith.mulf %105, %108 : vector<8x128xf32>
    %c25 = arith.constant 25 : index
    %c0_46 = arith.constant 0 : index
    %110 = vector.load %arg1[%c25, %c0_46] : memref<40x128xf32, #tpu.memory_space<vmem>>, vector<1x128xf32>
    %111 = vector.broadcast %110 : vector<1x128xf32> to vector<8x128xf32>
    %112 = arith.mulf %106, %111 : vector<8x128xf32>
    %113 = arith.addf %109, %112 : vector<8x128xf32>
    %c0_47 = arith.constant 0 : index
    %c0_48 = arith.constant 0 : index
    %114 = vector.load %arg2[%c0_47, %c0_48] : memref<8x128xf32, #tpu.memory_space<vmem>>, vector<8x128xf32>
    tpu.vector_store %arg2[%c0_47, %c0_48], %113 {strides = array<i32>} : memref<8x128xf32, #tpu.memory_space<vmem>>, vector<8x128xf32>,
    return
  }
}

</mosaic_0001>

<llo_original>
// kernel: simple_gnn_forward.1
$region0: #{simple_gnn_forward.1}
  #allocation0 [shape = 'u32[]', space=smem, size = 0x4, offset = 0x4, fixed_abs, tag = 'smem constant byte address 0x4 - core index']
  #allocation1 [shape = 'u32[144,128]{1,0:T(1,128)}', space=vmem, size = 0x12000, scoped, tag = 'internal scratch']
  %s0 = inlined_call_operand.vmem [shape: bf16[464,128], index: 0, kind: input, shape index: {}]
  %s1 = inlined_call_operand.vmem [shape: f32[40,128], index: 1, kind: input, shape index: {}]
  %s2 = inlined_call_operand.vmem [shape: f32[8,128], index: 2, kind: output, shape index: {}]
  %s3 = sld [smem:[#allocation0]]
  $region18: #{simple_gnn_forward.1} parent=0
    _
  %s5 = ssub.s32 1, %s3
  %s6 = scalar_select 0, %s5, %s3
  // Predicated region
  $region2: #{simple_gnn_forward.1} parent=0 // pred_check
    _
  $region3: #{simple_gnn_forward.1} parent=0 // pred_check_branch
    %8 = sbr.rel (0) target = $region5
  $region4: #{simple_gnn_forward.1} parent=0 // pred_region
    _
  $region5: #{simple_gnn_forward.1} parent=0 // pred_fallthru
    _
  // Predicated region
  $region6: #{simple_gnn_forward.1} parent=0 // pred_check
    _
  $region7: #{simple_gnn_forward.1} parent=0 // pred_check_branch
    %10 = sbr.rel (0) target = $region9
  $region8: #{simple_gnn_forward.1} parent=0 // pred_region
    _
  $region9: #{simple_gnn_forward.1} parent=0 // pred_fallthru
    _
  %v12 = vld [vmem:[%s0 + $0x10] sm:$0xf]
  %v13 = vld [vmem:[%s0 + $0x14] sm:$0xf]
  %v14 = vld [vmem:[%s0 + $0x18] sm:$0xf]
  %v15 = vld [vmem:[%s0 + $0x1c] sm:$0xf]
  %v16 = vld [vmem:[%s0 + $0x20] sm:$0xf]
  %v17 = vld [vmem:[%s0] sm:$0xf]
  %v18 = vld [vmem:[%s0 + $0x4] sm:$0xf]
  %v19 = vld [vmem:[%s0 + $0x8] sm:$0xf]
  %v20 = vld [vmem:[%s0 + $0xc] sm:$0xf]
  %v21 = vld [vmem:[%s1] sm:$0x1]
  %v22 = vld [vmem:[%s1 + $0x1] sm:$0x1]
  %v23 = vld [vmem:[%s1 + $0x2] sm:$0x1]
  %v24 = vld [vmem:[%s1 + $0x3] sm:$0x1]
  %v25 = vld [vmem:[%s0 + $0x28] sm:$0xf]
  %v26 = vld [vmem:[%s0 + $0x2c] sm:$0xf]
  %v27 = vld [vmem:[%s0 + $0x30] sm:$0xf]
  %v28 = vld [vmem:[%s0 + $0x34] sm:$0xf]
  %v29 = vld [vmem:[%s0 + $0x38] sm:$0xf]
  %v30 = vld [vmem:[%s0 + $0x3c] sm:$0xf]
  %v31 = vld [vmem:[%s0 + $0x40] sm:$0xf]
  %v32 = vld [vmem:[%s0 + $0x44] sm:$0xf]
  %v33 = vld [vmem:[%s0 + $0x48] sm:$0xf]
  %v34 = vld [vmem:[%s0 + $0x4c] sm:$0xf]
  %v35 = vld [vmem:[%s0 + $0x50] sm:$0xf]
  %v36 = vld [vmem:[%s0 + $0x54] sm:$0xf]
  %v37 = vld [vmem:[%s0 + $0x58] sm:$0xf]
  %v38 = vld [vmem:[%s0 + $0x5c] sm:$0xf]
  %v39 = vld [vmem:[%s0 + $0x60] sm:$0xf]
  %v40 = vld [vmem:[%s0 + $0x64] sm:$0xf]
  %v41 = vunpack.c.l.bf16 %v25
  %v42 = vunpack.c.l.bf16 %v26
  %v43 = vunpack.c.l.bf16 %v27
  %v44 = vunpack.c.l.bf16 %v28
  %v45 = vunpack.c.l.bf16 %v29
  %v46 = vunpack.c.l.bf16 %v30
  %v47 = vunpack.c.l.bf16 %v31
  %v48 = vunpack.c.l.bf16 %v32
  %v49 = vunpack.c.l.bf16 %v33
  %v50 = vunpack.c.l.bf16 %v34
  %v51 = vunpack.c.l.bf16 %v35
  %v52 = vunpack.c.l.bf16 %v36
  %v53 = vunpack.c.l.bf16 %v37
  %v54 = vunpack.c.l.bf16 %v38
  %v55 = vunpack.c.l.bf16 %v39
  %v56 = vunpack.c.l.bf16 %v40
  %v61 = vunpack.c.l.b16 %v12
  %v62 = vunpack.c.l.b16 %v13
  %v63 = vunpack.c.l.b16 %v14
  %v64 = vunpack.c.l.b16 %v15
  %v65 = vpack.c.b16 %v62, %v61
  %v66 = vpack.c.b16 %v64, %v63
  %v71 = vunpack.c.l.b16 %v17
  %v72 = vunpack.c.l.b16 %v18
  %v73 = vunpack.c.l.b16 %v19
  %v74 = vunpack.c.l.b16 %v20
  %v75 = vpack.c.b16 %v72, %v71
  %v76 = vpack.c.b16 %v74, %v73
  %vm79 = vcmask 261120
  %v81 = vsel %vm79, %v65, 0
  %v84 = vsel %vm79, %v66, 0
  %86 = vmatprep.subr.bf16.mxu0 0
  %87 = vmatpush1.bf16.msra.mxu0 0
  %88 = vmatprep.subr.bf16.mxu0 0
  %89 = vmatpush1.bf16.msra.mxu0 0
  %90 = vmatprep.subr.bf16.mxu0 0
  %91 = vmatpush1.bf16.msra.mxu0 0
  %92 = vmatprep.subr.bf16.mxu0 0
  %93 = vmatpush1.bf16.msra.mxu0 0
  %94 = vmatprep.subr.bf16.mxu0 0
  %95 = vmatpush1.bf16.msra.mxu0 0
  %96 = vmatprep.subr.bf16.mxu0 0
  %97 = vmatpush1.bf16.msra.mxu0 0
  %98 = vmatprep.subr.bf16.mxu0 0
  %99 = vmatpush1.bf16.msra.mxu0 %v76
  %100 = vmatprep.subr.bf16.mxu0 0
  %101 = vmatpush1.bf16.msra.mxu0 %v75
  %102 = vmatprep.subr.bf16.mxu0 0
  %103 = vmatpush2.bf16.msra.mxu0 0
  %104 = vmatprep.subr.bf16.mxu0 0
  %105 = vmatpush2.bf16.msra.mxu0 0
  %106 = vmatprep.subr.bf16.mxu0 0
  %107 = vmatpush2.bf16.msra.mxu0 0
  %108 = vmatprep.subr.bf16.mxu0 0
  %109 = vmatpush2.bf16.msra.mxu0 0
  %110 = vmatprep.subr.bf16.mxu0 0
  %111 = vmatpush2.bf16.msra.mxu0 0
  %112 = vmatprep.subr.bf16.mxu0 0
  %113 = vmatpush2.bf16.msra.mxu0 0
  %114 = vmatprep.subr.bf16.mxu0 0
  %115 = vmatpush2.bf16.msra.mxu0 0
  %116 = vmatprep.subr.bf16.mxu0 0
  %117 = vmatpush2.bf16.msra.mxu0 0
  %118 = vmatprep.mubr.bf16.mxu0 0
  %119 = vmatmul.mubr.bf16.gmra.mxu0 %v81
  %v120 = vpop.f32.mrf.mxu0
  %v121 = vadd.f32 0.0, %v120
  %v122 = vpop.f32.mrf.mxu0
  %v123 = vpop.f32.mrf.mxu0
  %v124 = vadd.f32 0.0, %v123
  %v125 = vpop.f32.mrf.mxu0
  %126 = vmatprep.mubr.bf16.mxu0 0
  %127 = vmatmul.mubr.bf16.gmra.mxu0 %v84
  %v128 = vpop.f32.mrf.mxu0
  %v129 = vadd.f32 0.0, %v128
  %v130 = vpop.f32.mrf.mxu0
  %v131 = vpop.f32.mrf.mxu0
  %v132 = vadd.f32 0.0, %v131
  %v133 = vpop.f32.mrf.mxu0
  %134 = vdwg.mxu0
  %v135 = vlaneseq
  %v136 = vshrl.u32 %v135, 7
  %v137 = vsub.s32 0, %v136
  %v138 = vrot.slane %v21, %v137
  %139 = vmatprep.subr.mxu0 0.0
  %140 = vmatpush1.msra.mxu0 %v56
  %141 = vmatprep.subr.mxu0 0.0
  %142 = vmatpush1.msra.mxu0 %v55
  %143 = vmatprep.subr.mxu0 0.0
  %144 = vmatpush1.msra.mxu0 %v54
  %145 = vmatprep.subr.mxu0 0.0
  %146 = vmatpush1.msra.mxu0 %v53
  %147 = vmatprep.subr.mxu0 0.0
  %148 = vmatpush1.msra.mxu0 %v52
  %149 = vmatprep.subr.mxu0 0.0
  %150 = vmatpush1.msra.mxu0 %v51
  %151 = vmatprep.subr.mxu0 0.0
  %152 = vmatpush1.msra.mxu0 %v50
  %153 = vmatprep.subr.mxu0 0.0
  %154 = vmatpush1.msra.mxu0 %v49
  %155 = vmatprep.subr.mxu0 0.0
  %156 = vmatpush1.msra.mxu0 %v48
  %157 = vmatprep.subr.mxu0 0.0
  %158 = vmatpush1.msra.mxu0 %v47
  %159 = vmatprep.subr.mxu0 0.0
  %160 = vmatpush1.msra.mxu0 %v46
  %161 = vmatprep.subr.mxu0 0.0
  %162 = vmatpush1.msra.mxu0 %v45
  %163 = vmatprep.subr.mxu0 0.0
  %164 = vmatpush1.msra.mxu0 %v44
  %165 = vmatprep.subr.mxu0 0.0
  %166 = vmatpush1.msra.mxu0 %v43
  %167 = vmatprep.subr.mxu0 0.0
  %168 = vmatpush1.msra.mxu0 %v42
  %169 = vmatprep.subr.mxu0 0.0
  %170 = vmatpush1.msra.mxu0 %v41
  %171 = vmatprep.subr.mxu0 0.0
  %172 = vmatpush2.msra.mxu0 0.0
  %173 = vmatprep.subr.mxu0 0.0
  %174 = vmatpush2.msra.mxu0 0.0
  %175 = vmatprep.subr.mxu0 0.0
  %176 = vmatpush2.msra.mxu0 0.0
  %177 = vmatprep.subr.mxu0 0.0
  %178 = vmatpush2.msra.mxu0 0.0
  %179 = vmatprep.subr.mxu0 0.0
  %180 = vmatpush2.msra.mxu0 0.0
  %181 = vmatprep.subr.mxu0 0.0
  %182 = vmatpush2.msra.mxu0 0.0
  %183 = vmatprep.subr.mxu0 0.0
  %184 = vmatpush2.msra.mxu0 0.0
  %185 = vmatprep.subr.mxu0 0.0
  %186 = vmatpush2.msra.mxu0 0.0
  %187 = vmatprep.subr.mxu0 0.0
  %188 = vmatpush2.msra.mxu0 0.0
  %189 = vmatprep.subr.mxu0 0.0
  %190 = vmatpush2.msra.mxu0 0.0
  %191 = vmatprep.subr.mxu0 0.0
  %192 = vmatpush2.msra.mxu0 0.0
  %193 = vmatprep.subr.mxu0 0.0
  %194 = vmatpush2.msra.mxu0 0.0
  %195 = vmatprep.subr.mxu0 0.0
  %196 = vmatpush2.msra.mxu0 0.0
  %197 = vmatprep.subr.mxu0 0.0
  %198 = vmatpush2.msra.mxu0 0.0
  %199 = vmatprep.subr.mxu0 0.0
  %200 = vmatpush2.msra.mxu0 0.0
  %201 = vmatprep.subr.mxu0 0.0
  %202 = vmatpush2.msra.mxu0 0.0
  %203 = vmatprep.mubr.f32.mxu0 0.0
  %204 = vmatmul.mubr.f32.gmra.mxu0 %v121
  %v205 = vpop.f32.mrf.mxu0
  %v206 = vadd.f32 %v138, %v205
  %v207 = vpop.f32.mrf.mxu0
  %208 = vmatprep.mubr.f32.mxu0 0.0
  %209 = vmatmul.mubr.f32.gmra.mxu0 %v124
  %v210 = vpop.f32.mrf.mxu0
  %v211 = vadd.f32 %v138, %v210
  %v212 = vpop.f32.mrf.mxu0
  %213 = vmatprep.mubr.f32.mxu0 0.0
  %214 = vmatmul.mubr.f32.gmra.mxu0 %v129
  %v215 = vpop.f32.mrf.mxu0
  %v216 = vadd.f32 %v138, %v215
  %v217 = vpop.f32.mrf.mxu0
  %218 = vmatprep.mubr.f32.mxu0 0.0
  %219 = vmatmul.mubr.f32.gmra.mxu0 %v132
  %v220 = vpop.f32.mrf.mxu0
  %v221 = vadd.f32 %v138, %v220
  %v222 = vpop.f32.mrf.mxu0
  %223 = vdwg.mxu0
  %v224 = vadd.f32 %v206, %v211
  %v225 = vadd.f32 %v224, %v216
  %v226 = vadd.f32 %v225, %v221
  %v227 = vrot.slane %v226, 4
  %v228 = vadd.f32 %v226, %v227
  %v229 = vrot.slane %v228, 2
  %v230 = vadd.f32 %v228, %v229
  %v231 = vrot.slane %v230, 1
  %v232 = vadd.f32 %v230, %v231
  %v233 = vrcp.pop 32.0
  %v234 = vmul.f32 %v232, %v233
  %v235 = vmul.f32 %v24, %v234
  %v236 = vlaneseq
  %v237 = vshrl.u32 %v236, 7
  %v238 = vsub.s32 0, %v237
  %v239 = vrot.slane %v235, %v238
  %v240 = vsub.f32 %v206, %v239
  %v241 = vsub.f32 %v211, %v239
  %v242 = vsub.f32 %v216, %v239
  %v243 = vsub.f32 %v221, %v239
  %v244 = vmul.f32 %v240, %v240
  %v245 = vmul.f32 %v241, %v241
  %v246 = vmul.f32 %v242, %v242
  %v247 = vmul.f32 %v243, %v243
  %v248 = vadd.f32 %v244, %v245
  %v249 = vadd.f32 %v248, %v246
  %v250 = vadd.f32 %v249, %v247
  %v251 = vrot.slane %v250, 4
  %v252 = vadd.f32 %v250, %v251
  %v253 = vrot.slane %v252, 2
  %v254 = vadd.f32 %v252, %v253
  %v255 = vrot.slane %v254, 1
  %v256 = vadd.f32 %v254, %v255
  %v257 = vmul.f32 %v256, %v233
  %v258 = vlaneseq
  %v259 = vshrl.u32 %v258, 7
  %v260 = vsub.s32 0, %v259
  %v261 = vrot.slane %v22, %v260
  %v262 = vmul.f32 %v261, %v240
  %v263 = vmul.f32 %v261, %v241
  %v264 = vmul.f32 %v261, %v242
  %v265 = vmul.f32 %v261, %v243
  %v266 = vadd.f32 %v257, 1e-05
  %v267 = vrsqrt.pop %v266
  %v268 = vmul.f32 %v262, %v267
  %v269 = vmul.f32 %v263, %v267
  %v270 = vmul.f32 %v264, %v267
  %v271 = vmul.f32 %v265, %v267
  %v272 = vlaneseq
  %v273 = vshrl.u32 %v272, 7
  %v274 = vsub.s32 0, %v273
  %v275 = vrot.slane %v23, %v274
  %v276 = vadd.f32 %v268, %v275
  %v277 = vadd.f32 %v269, %v275
  %v278 = vadd.f32 %v270, %v275
  %v279 = vadd.f32 %v271, %v275
  %v280 = vmax.f32 %v276, 0.0
  %v281 = vmax.f32 %v277, 0.0
  %v282 = vmax.f32 %v278, 0.0
  %v283 = vmax.f32 %v279, 0.0
  %v284 = vpack.c.bf16 %v281, %v280
  %v285 = vpack.c.bf16 %v283, %v282
  %v286 = vld [vmem:[%s1 + $0x8] sm:$0x1]
  %v287 = vld [vmem:[%s1 + $0x9] sm:$0x1]
  %v288 = vld [vmem:[%s1 + $0xa] sm:$0x1]
  %v289 = vld [vmem:[%s1 + $0xb] sm:$0x1]
  %v290 = vld [vmem:[%s0 + $0x68] sm:$0xf]
  %v291 = vld [vmem:[%s0 + $0x6c] sm:$0xf]
  %v292 = vld [vmem:[%s0 + $0x70] sm:$0xf]
  %v293 = vld [vmem:[%s0 + $0x74] sm:$0xf]
  %v294 = vld [vmem:[%s0 + $0x78] sm:$0xf]
  %v295 = vld [vmem:[%s0 + $0x7c] sm:$0xf]
  %v296 = vld [vmem:[%s0 + $0x80] sm:$0xf]
  %v297 = vld [vmem:[%s0 + $0x84] sm:$0xf]
  %v298 = vld [vmem:[%s0 + $0x88] sm:$0xf]
  %v299 = vld [vmem:[%s0 + $0x8c] sm:$0xf]
  %v300 = vld [vmem:[%s0 + $0x90] sm:$0xf]
  %v301 = vld [vmem:[%s0 + $0x94] sm:$0xf]
  %v302 = vld [vmem:[%s0 + $0x98] sm:$0xf]
  %v303 = vld [vmem:[%s0 + $0x9c] sm:$0xf]
  %v304 = vld [vmem:[%s0 + $0xa0] sm:$0xf]
  %v305 = vld [vmem:[%s0 + $0xa4] sm:$0xf]
  %v306 = vunpack.c.l.bf16 %v290
  %v307 = vunpack.c.l.bf16 %v291
  %v308 = vunpack.c.l.bf16 %v292
  %v309 = vunpack.c.l.bf16 %v293
  %v310 = vunpack.c.l.bf16 %v294
  %v311 = vunpack.c.l.bf16 %v295
  %v312 = vunpack.c.l.bf16 %v296
  %v313 = vunpack.c.l.bf16 %v297
  %v314 = vunpack.c.l.bf16 %v298
  %v315 = vunpack.c.l.bf16 %v299
  %v316 = vunpack.c.l.bf16 %v300
  %v317 = vunpack.c.l.bf16 %v301
  %v318 = vunpack.c.l.bf16 %v302
  %v319 = vunpack.c.l.bf16 %v303
  %v320 = vunpack.c.l.bf16 %v304
  %v321 = vunpack.c.l.bf16 %v305
  %322 = vmatprep.subr.bf16.mxu0 0
  %323 = vmatpush1.bf16.msra.mxu0 0
  %324 = vmatprep.subr.bf16.mxu0 0
  %325 = vmatpush1.bf16.msra.mxu0 0
  %326 = vmatprep.subr.bf16.mxu0 0
  %327 = vmatpush1.bf16.msra.mxu0 0
  %328 = vmatprep.subr.bf16.mxu0 0
  %329 = vmatpush1.bf16.msra.mxu0 0
  %330 = vmatprep.subr.bf16.mxu0 0
  %331 = vmatpush1.bf16.msra.mxu0 0
  %332 = vmatprep.subr.bf16.mxu0 0
  %333 = vmatpush1.bf16.msra.mxu0 0
  %334 = vmatprep.subr.bf16.mxu0 0
  %335 = vmatpush1.bf16.msra.mxu0 %v285
  %336 = vmatprep.subr.bf16.mxu0 0
  %337 = vmatpush1.bf16.msra.mxu0 %v284
  %338 = vmatprep.subr.bf16.mxu0 0
  %339 = vmatpush2.bf16.msra.mxu0 0
  %340 = vmatprep.subr.bf16.mxu0 0
  %341 = vmatpush2.bf16.msra.mxu0 0
  %342 = vmatprep.subr.bf16.mxu0 0
  %343 = vmatpush2.bf16.msra.mxu0 0
  %344 = vmatprep.subr.bf16.mxu0 0
  %345 = vmatpush2.bf16.msra.mxu0 0
  %346 = vmatprep.subr.bf16.mxu0 0
  %347 = vmatpush2.bf16.msra.mxu0 0
  %348 = vmatprep.subr.bf16.mxu0 0
  %349 = vmatpush2.bf16.msra.mxu0 0
  %350 = vmatprep.subr.bf16.mxu0 0
  %351 = vmatpush2.bf16.msra.mxu0 0
  %352 = vmatprep.subr.bf16.mxu0 0
  %353 = vmatpush2.bf16.msra.mxu0 0
  %354 = vmatprep.mubr.bf16.mxu0 0
  %355 = vmatmul.mubr.bf16.gmra.mxu0 %v81
  %v356 = vpop.f32.mrf.mxu0
  %v357 = vadd.f32 0.0, %v356
  %v358 = vpop.f32.mrf.mxu0
  %v359 = vpop.f32.mrf.mxu0
  %v360 = vadd.f32 0.0, %v359
  %v361 = vpop.f32.mrf.mxu0
  %362 = vmatprep.mubr.bf16.mxu0 0
  %363 = vmatmul.mubr.bf16.gmra.mxu0 %v84
  %v364 = vpop.f32.mrf.mxu0
  %v365 = vadd.f32 0.0, %v364
  %v366 = vpop.f32.mrf.mxu0
  %v367 = vpop.f32.mrf.mxu0
  %v368 = vadd.f32 0.0, %v367
  %v369 = vpop.f32.mrf.mxu0
  %370 = vdwg.mxu0
  %v371 = vlaneseq
  %v372 = vshrl.u32 %v371, 7
  %v373 = vsub.s32 0, %v372
  %v374 = vrot.slane %v286, %v373
  %375 = vmatprep.subr.mxu0 0.0
  %376 = vmatpush1.msra.mxu0 %v321
  %377 = vmatprep.subr.mxu0 0.0
  %378 = vmatpush1.msra.mxu0 %v320
  %379 = vmatprep.subr.mxu0 0.0
  %380 = vmatpush1.msra.mxu0 %v319
  %381 = vmatprep.subr.mxu0 0.0
  %382 = vmatpush1.msra.mxu0 %v318
  %383 = vmatprep.subr.mxu0 0.0
  %384 = vmatpush1.msra.mxu0 %v317
  %385 = vmatprep.subr.mxu0 0.0
  %386 = vmatpush1.msra.mxu0 %v316
  %387 = vmatprep.subr.mxu0 0.0
  %388 = vmatpush1.msra.mxu0 %v315
  %389 = vmatprep.subr.mxu0 0.0
  %390 = vmatpush1.msra.mxu0 %v314
  %391 = vmatprep.subr.mxu0 0.0
  %392 = vmatpush1.msra.mxu0 %v313
  %393 = vmatprep.subr.mxu0 0.0
  %394 = vmatpush1.msra.mxu0 %v312
  %395 = vmatprep.subr.mxu0 0.0
  %396 = vmatpush1.msra.mxu0 %v311
  %397 = vmatprep.subr.mxu0 0.0
  %398 = vmatpush1.msra.mxu0 %v310
  %399 = vmatprep.subr.mxu0 0.0
  %400 = vmatpush1.msra.mxu0 %v309
  %401 = vmatprep.subr.mxu0 0.0
  %402 = vmatpush1.msra.mxu0 %v308
  %403 = vmatprep.subr.mxu0 0.0
  %404 = vmatpush1.msra.mxu0 %v307
  %405 = vmatprep.subr.mxu0 0.0
  %406 = vmatpush1.msra.mxu0 %v306
  %407 = vmatprep.subr.mxu0 0.0
  %408 = vmatpush2.msra.mxu0 0.0
  %409 = vmatprep.subr.mxu0 0.0
  %410 = vmatpush2.msra.mxu0 0.0
  %411 = vmatprep.subr.mxu0 0.0
  %412 = vmatpush2.msra.mxu0 0.0
  %413 = vmatprep.subr.mxu0 0.0
  %414 = vmatpush2.msra.mxu0 0.0
  %415 = vmatprep.subr.mxu0 0.0
  %416 = vmatpush2.msra.mxu0 0.0
  %417 = vmatprep.subr.mxu0 0.0
  %418 = vmatpush2.msra.mxu0 0.0
  %419 = vmatprep.subr.mxu0 0.0
  %420 = vmatpush2.msra.mxu0 0.0
  %421 = vmatprep.subr.mxu0 0.0
  %422 = vmatpush2.msra.mxu0 0.0
  %423 = vmatprep.subr.mxu0 0.0
  %424 = vmatpush2.msra.mxu0 0.0
  %425 = vmatprep.subr.mxu0 0.0
  %426 = vmatpush2.msra.mxu0 0.0
  %427 = vmatprep.subr.mxu0 0.0
  %428 = vmatpush2.msra.mxu0 0.0
  %429 = vmatprep.subr.mxu0 0.0
  %430 = vmatpush2.msra.mxu0 0.0
  %431 = vmatprep.subr.mxu0 0.0
  %432 = vmatpush2.msra.mxu0 0.0
  %433 = vmatprep.subr.mxu0 0.0
  %434 = vmatpush2.msra.mxu0 0.0
  %435 = vmatprep.subr.mxu0 0.0
  %436 = vmatpush2.msra.mxu0 0.0
  %437 = vmatprep.subr.mxu0 0.0
  %438 = vmatpush2.msra.mxu0 0.0
  %439 = vmatprep.mubr.f32.mxu0 0.0
  %440 = vmatmul.mubr.f32.gmra.mxu0 %v357
  %v441 = vpop.f32.mrf.mxu0
  %v442 = vadd.f32 %v374, %v441
  %v443 = vpop.f32.mrf.mxu0
  %444 = vmatprep.mubr.f32.mxu0 0.0
  %445 = vmatmul.mubr.f32.gmra.mxu0 %v360
  %v446 = vpop.f32.mrf.mxu0
  %v447 = vadd.f32 %v374, %v446
  %v448 = vpop.f32.mrf.mxu0
  %449 = vmatprep.mubr.f32.mxu0 0.0
  %450 = vmatmul.mubr.f32.gmra.mxu0 %v365
  %v451 = vpop.f32.mrf.mxu0
  %v452 = vadd.f32 %v374, %v451
  %v453 = vpop.f32.mrf.mxu0
  %454 = vmatprep.mubr.f32.mxu0 0.0
  %455 = vmatmul.mubr.f32.gmra.mxu0 %v368
  %v456 = vpop.f32.mrf.mxu0
  %v457 = vadd.f32 %v374, %v456
  %v458 = vpop.f32.mrf.mxu0
  %459 = vdwg.mxu0
  %v460 = vadd.f32 %v442, %v447
  %v461 = vadd.f32 %v460, %v452
  %v462 = vadd.f32 %v461, %v457
  %v463 = vrot.slane %v462, 4
  %v464 = vadd.f32 %v462, %v463
  %v465 = vrot.slane %v464, 2
  %v466 = vadd.f32 %v464, %v465
  %v467 = vrot.slane %v466, 1
  %v468 = vadd.f32 %v466, %v467
  %v469 = vmul.f32 %v468, %v233
  %v470 = vmul.f32 %v289, %v469
  %v471 = vlaneseq
  %v472 = vshrl.u32 %v471, 7
  %v473 = vsub.s32 0, %v472
  %v474 = vrot.slane %v470, %v473
  %v475 = vsub.f32 %v442, %v474
  %v476 = vsub.f32 %v447, %v474
  %v477 = vsub.f32 %v452, %v474
  %v478 = vsub.f32 %v457, %v474
  %v479 = vmul.f32 %v475, %v475
  %v480 = vmul.f32 %v476, %v476
  %v481 = vmul.f32 %v477, %v477
  %v482 = vmul.f32 %v478, %v478
  %v483 = vadd.f32 %v479, %v480
  %v484 = vadd.f32 %v483, %v481
  %v485 = vadd.f32 %v484, %v482
  %v486 = vrot.slane %v485, 4
  %v487 = vadd.f32 %v485, %v486
  %v488 = vrot.slane %v487, 2
  %v489 = vadd.f32 %v487, %v488
  %v490 = vrot.slane %v489, 1
  %v491 = vadd.f32 %v489, %v490
  %v492 = vmul.f32 %v491, %v233
  %v493 = vlaneseq
  %v494 = vshrl.u32 %v493, 7
  %v495 = vsub.s32 0, %v494
  %v496 = vrot.slane %v287, %v495
  %v497 = vmul.f32 %v496, %v475
  %v498 = vmul.f32 %v496, %v476
  %v499 = vmul.f32 %v496, %v477
  %v500 = vmul.f32 %v496, %v478
  %v501 = vadd.f32 %v492, 1e-05
  %v502 = vrsqrt.pop %v501
  %v503 = vmul.f32 %v497, %v502
  %v504 = vmul.f32 %v498, %v502
  %v505 = vmul.f32 %v499, %v502
  %v506 = vmul.f32 %v500, %v502
  %v507 = vlaneseq
  %v508 = vshrl.u32 %v507, 7
  %v509 = vsub.s32 0, %v508
  %v510 = vrot.slane %v288, %v509
  %v511 = vadd.f32 %v503, %v510
  %v512 = vadd.f32 %v504, %v510
  %v513 = vadd.f32 %v505, %v510
  %v514 = vadd.f32 %v506, %v510
  %v515 = vmax.f32 %v511, 0.0
  %v516 = vmax.f32 %v512, 0.0
  %v517 = vmax.f32 %v513, 0.0
  %v518 = vmax.f32 %v514, 0.0
  %v519 = vpack.c.bf16 %v516, %v515
  %v520 = vpack.c.bf16 %v518, %v517
  %v521 = vld [vmem:[%s1 + $0x10] sm:$0x1]
  %v522 = vld [vmem:[%s1 + $0x11] sm:$0x1]
  %v523 = vld [vmem:[%s1 + $0x12] sm:$0x1]
  %v524 = vld [vmem:[%s1 + $0x13] sm:$0x1]
  %v525 = vld [vmem:[%s0 + $0xa8] sm:$0xf]
  %v526 = vld [vmem:[%s0 + $0xac] sm:$0xf]
  %v527 = vld [vmem:[%s0 + $0xb0] sm:$0xf]
  %v528 = vld [vmem:[%s0 + $0xb4] sm:$0xf]
  %v529 = vld [vmem:[%s0 + $0xb8] sm:$0xf]
  %v530 = vld [vmem:[%s0 + $0xbc] sm:$0xf]
  %v531 = vld [vmem:[%s0 + $0xc0] sm:$0xf]
  %v532 = vld [vmem:[%s0 + $0xc4] sm:$0xf]
  %v533 = vld [vmem:[%s0 + $0xc8] sm:$0xf]
  %v534 = vld [vmem:[%s0 + $0xcc] sm:$0xf]
  %v535 = vld [vmem:[%s0 + $0xd0] sm:$0xf]
  %v536 = vld [vmem:[%s0 + $0xd4] sm:$0xf]
  %v537 = vld [vmem:[%s0 + $0xd8] sm:$0xf]
  %v538 = vld [vmem:[%s0 + $0xdc] sm:$0xf]
  %v539 = vld [vmem:[%s0 + $0xe0] sm:$0xf]
  %v540 = vld [vmem:[%s0 + $0xe4] sm:$0xf]
  %v541 = vunpack.c.l.bf16 %v525
  %v542 = vunpack.c.l.bf16 %v526
  %v543 = vunpack.c.l.bf16 %v527
  %v544 = vunpack.c.l.bf16 %v528
  %v545 = vunpack.c.l.bf16 %v529
  %v546 = vunpack.c.l.bf16 %v530
  %v547 = vunpack.c.l.bf16 %v531
  %v548 = vunpack.c.l.bf16 %v532
  %v549 = vunpack.c.l.bf16 %v533
  %v550 = vunpack.c.l.bf16 %v534
  %v551 = vunpack.c.l.bf16 %v535
  %v552 = vunpack.c.l.bf16 %v536
  %v553 = vunpack.c.l.bf16 %v537
  %v554 = vunpack.c.l.bf16 %v538
  %v555 = vunpack.c.l.bf16 %v539
  %v556 = vunpack.c.l.bf16 %v540
  %557 = vmatprep.subr.bf16.mxu0 0
  %558 = vmatpush1.bf16.msra.mxu0 0
  %559 = vmatprep.subr.bf16.mxu0 0
  %560 = vmatpush1.bf16.msra.mxu0 0
  %561 = vmatprep.subr.bf16.mxu0 0
  %562 = vmatpush1.bf16.msra.mxu0 0
  %563 = vmatprep.subr.bf16.mxu0 0
  %564 = vmatpush1.bf16.msra.mxu0 0
  %565 = vmatprep.subr.bf16.mxu0 0
  %566 = vmatpush1.bf16.msra.mxu0 0
  %567 = vmatprep.subr.bf16.mxu0 0
  %568 = vmatpush1.bf16.msra.mxu0 0
  %569 = vmatprep.subr.bf16.mxu0 0
  %570 = vmatpush1.bf16.msra.mxu0 %v520
  %571 = vmatprep.subr.bf16.mxu0 0
  %572 = vmatpush1.bf16.msra.mxu0 %v519
  %573 = vmatprep.subr.bf16.mxu0 0
  %574 = vmatpush2.bf16.msra.mxu0 0
  %575 = vmatprep.subr.bf16.mxu0 0
  %576 = vmatpush2.bf16.msra.mxu0 0
  %577 = vmatprep.subr.bf16.mxu0 0
  %578 = vmatpush2.bf16.msra.mxu0 0
  %579 = vmatprep.subr.bf16.mxu0 0
  %580 = vmatpush2.bf16.msra.mxu0 0
  %581 = vmatprep.subr.bf16.mxu0 0
  %582 = vmatpush2.bf16.msra.mxu0 0
  %583 = vmatprep.subr.bf16.mxu0 0
  %584 = vmatpush2.bf16.msra.mxu0 0
  %585 = vmatprep.subr.bf16.mxu0 0
  %586 = vmatpush2.bf16.msra.mxu0 0
  %587 = vmatprep.subr.bf16.mxu0 0
  %588 = vmatpush2.bf16.msra.mxu0 0
  %589 = vmatprep.mubr.bf16.mxu0 0
  %590 = vmatmul.mubr.bf16.gmra.mxu0 %v81
  %v591 = vpop.f32.mrf.mxu0
  %v592 = vadd.f32 0.0, %v591
  %v593 = vpop.f32.mrf.mxu0
  %v594 = vpop.f32.mrf.mxu0
  %v595 = vadd.f32 0.0, %v594
  %v596 = vpop.f32.mrf.mxu0
  %597 = vmatprep.mubr.bf16.mxu0 0
  %598 = vmatmul.mubr.bf16.gmra.mxu0 %v84
  %v599 = vpop.f32.mrf.mxu0
  %v600 = vadd.f32 0.0, %v599
  %v601 = vpop.f32.mrf.mxu0
  %v602 = vpop.f32.mrf.mxu0
  %v603 = vadd.f32 0.0, %v602
  %v604 = vpop.f32.mrf.mxu0
  %605 = vdwg.mxu0
  %v606 = vlaneseq
  %v607 = vshrl.u32 %v606, 7
  %v608 = vsub.s32 0, %v607
  %v609 = vrot.slane %v521, %v608
  %610 = vmatprep.subr.mxu0 0.0
  %611 = vmatpush1.msra.mxu0 %v556
  %612 = vmatprep.subr.mxu0 0.0
  %613 = vmatpush1.msra.mxu0 %v555
  %614 = vmatprep.subr.mxu0 0.0
  %615 = vmatpush1.msra.mxu0 %v554
  %616 = vmatprep.subr.mxu0 0.0
  %617 = vmatpush1.msra.mxu0 %v553
  %618 = vmatprep.subr.mxu0 0.0
  %619 = vmatpush1.msra.mxu0 %v552
  %620 = vmatprep.subr.mxu0 0.0
  %621 = vmatpush1.msra.mxu0 %v551
  %622 = vmatprep.subr.mxu0 0.0
  %623 = vmatpush1.msra.mxu0 %v550
  %624 = vmatprep.subr.mxu0 0.0
  %625 = vmatpush1.msra.mxu0 %v549
  %626 = vmatprep.subr.mxu0 0.0
  %627 = vmatpush1.msra.mxu0 %v548
  %628 = vmatprep.subr.mxu0 0.0
  %629 = vmatpush1.msra.mxu0 %v547
  %630 = vmatprep.subr.mxu0 0.0
  %631 = vmatpush1.msra.mxu0 %v546
  %632 = vmatprep.subr.mxu0 0.0
  %633 = vmatpush1.msra.mxu0 %v545
  %634 = vmatprep.subr.mxu0 0.0
  %635 = vmatpush1.msra.mxu0 %v544
  %636 = vmatprep.subr.mxu0 0.0
  %637 = vmatpush1.msra.mxu0 %v543
  %638 = vmatprep.subr.mxu0 0.0
  %639 = vmatpush1.msra.mxu0 %v542
  %640 = vmatprep.subr.mxu0 0.0
  %641 = vmatpush1.msra.mxu0 %v541
  %642 = vmatprep.subr.mxu0 0.0
  %643 = vmatpush2.msra.mxu0 0.0
  %644 = vmatprep.subr.mxu0 0.0
  %645 = vmatpush2.msra.mxu0 0.0
  %646 = vmatprep.subr.mxu0 0.0
  %647 = vmatpush2.msra.mxu0 0.0
  %648 = vmatprep.subr.mxu0 0.0
  %649 = vmatpush2.msra.mxu0 0.0
  %650 = vmatprep.subr.mxu0 0.0
  %651 = vmatpush2.msra.mxu0 0.0
  %652 = vmatprep.subr.mxu0 0.0
  %653 = vmatpush2.msra.mxu0 0.0
  %654 = vmatprep.subr.mxu0 0.0
  %655 = vmatpush2.msra.mxu0 0.0
  %656 = vmatprep.subr.mxu0 0.0
  %657 = vmatpush2.msra.mxu0 0.0
  %658 = vmatprep.subr.mxu0 0.0
  %659 = vmatpush2.msra.mxu0 0.0
  %660 = vmatprep.subr.mxu0 0.0
  %661 = vmatpush2.msra.mxu0 0.0
  %662 = vmatprep.subr.mxu0 0.0
  %663 = vmatpush2.msra.mxu0 0.0
  %664 = vmatprep.subr.mxu0 0.0
  %665 = vmatpush2.msra.mxu0 0.0
  %666 = vmatprep.subr.mxu0 0.0
  %667 = vmatpush2.msra.mxu0 0.0
  %668 = vmatprep.subr.mxu0 0.0
  %669 = vmatpush2.msra.mxu0 0.0
  %670 = vmatprep.subr.mxu0 0.0
  %671 = vmatpush2.msra.mxu0 0.0
  %672 = vmatprep.subr.mxu0 0.0
  %673 = vmatpush2.msra.mxu0 0.0
  %674 = vmatprep.mubr.f32.mxu0 0.0
  %675 = vmatmul.mubr.f32.gmra.mxu0 %v592
  %v676 = vpop.f32.mrf.mxu0
  %v677 = vadd.f32 %v609, %v676
  %v678 = vpop.f32.mrf.mxu0
  %679 = vmatprep.mubr.f32.mxu0 0.0
  %680 = vmatmul.mubr.f32.gmra.mxu0 %v595
  %v681 = vpop.f32.mrf.mxu0
  %v682 = vadd.f32 %v609, %v681
  %v683 = vpop.f32.mrf.mxu0
  %684 = vmatprep.mubr.f32.mxu0 0.0
  %685 = vmatmul.mubr.f32.gmra.mxu0 %v600
  %v686 = vpop.f32.mrf.mxu0
  %v687 = vadd.f32 %v609, %v686
  %v688 = vpop.f32.mrf.mxu0
  %689 = vmatprep.mubr.f32.mxu0 0.0
  %690 = vmatmul.mubr.f32.gmra.mxu0 %v603
  %v691 = vpop.f32.mrf.mxu0
  %v692 = vadd.f32 %v609, %v691
  %v693 = vpop.f32.mrf.mxu0
  %694 = vdwg.mxu0
  %v695 = vadd.f32 %v677, %v682
  %v696 = vadd.f32 %v695, %v687
  %v697 = vadd.f32 %v696, %v692
  %v698 = vrot.slane %v697, 4
  %v699 = vadd.f32 %v697, %v698
  %v700 = vrot.slane %v699, 2
  %v701 = vadd.f32 %v699, %v700
  %v702 = vrot.slane %v701, 1
  %v703 = vadd.f32 %v701, %v702
  %v704 = vmul.f32 %v703, %v233
  %v705 = vmul.f32 %v524, %v704
  %v706 = vlaneseq
  %v707 = vshrl.u32 %v706, 7
  %v708 = vsub.s32 0, %v707
  %v709 = vrot.slane %v705, %v708
  %v710 = vsub.f32 %v677, %v709
  %v711 = vsub.f32 %v682, %v709
  %v712 = vsub.f32 %v687, %v709
  %v713 = vsub.f32 %v692, %v709
  %v714 = vmul.f32 %v710, %v710
  %v715 = vmul.f32 %v711, %v711
  %v716 = vmul.f32 %v712, %v712
  %v717 = vmul.f32 %v713, %v713
  %v718 = vadd.f32 %v714, %v715
  %v719 = vadd.f32 %v718, %v716
  %v720 = vadd.f32 %v719, %v717
  %v721 = vrot.slane %v720, 4
  %v722 = vadd.f32 %v720, %v721
  %v723 = vrot.slane %v722, 2
  %v724 = vadd.f32 %v722, %v723
  %v725 = vrot.slane %v724, 1
  %v726 = vadd.f32 %v724, %v725
  %v727 = vmul.f32 %v726, %v233
  %v728 = vlaneseq
  %v729 = vshrl.u32 %v728, 7
  %v730 = vsub.s32 0, %v729
  %v731 = vrot.slane %v522, %v730
  %v732 = vmul.f32 %v731, %v710
  %v733 = vmul.f32 %v731, %v711
  %v734 = vmul.f32 %v731, %v712
  %v735 = vmul.f32 %v731, %v713
  %v736 = vadd.f32 %v727, 1e-05
  %v737 = vrsqrt.pop %v736
  %v738 = vmul.f32 %v732, %v737
  %v739 = vmul.f32 %v733, %v737
  %v740 = vmul.f32 %v734, %v737
  %v741 = vmul.f32 %v735, %v737
  %v742 = vlaneseq
  %v743 = vshrl.u32 %v742, 7
  %v744 = vsub.s32 0, %v743
  %v745 = vrot.slane %v523, %v744
  %v746 = vadd.f32 %v738, %v745
  %v747 = vadd.f32 %v739, %v745
  %v748 = vadd.f32 %v740, %v745
  %v749 = vadd.f32 %v741, %v745
  %v750 = vmax.f32 %v746, 0.0
  %v751 = vmax.f32 %v747, 0.0
  %v752 = vmax.f32 %v748, 0.0
  %v753 = vmax.f32 %v749, 0.0
  %v754 = vpack.c.bf16 %v751, %v750
  %v755 = vpack.c.bf16 %v753, %v752
  %v757 = vsel %vm79, %v16, 0
  %759 = vmatprep.subr.bf16.mxu0 0
  %760 = vmatpush1.bf16.msra.mxu0 0
  %761 = vmatprep.subr.bf16.mxu0 0
  %762 = vmatpush1.bf16.msra.mxu0 0
  %763 = vmatprep.subr.bf16.mxu0 0
  %764 = vmatpush1.bf16.msra.mxu0 0
  %765 = vmatprep.subr.bf16.mxu0 0
  %766 = vmatpush1.bf16.msra.mxu0 0
  %767 = vmatprep.subr.bf16.mxu0 0
  %768 = vmatpush1.bf16.msra.mxu0 0
  %769 = vmatprep.subr.bf16.mxu0 0
  %770 = vmatpush1.bf16.msra.mxu0 0
  %771 = vmatprep.subr.bf16.mxu0 0
  %772 = vmatpush1.bf16.msra.mxu0 %v755
  %773 = vmatprep.subr.bf16.mxu0 0
  %774 = vmatpush1.bf16.msra.mxu0 %v754
  %775 = vmatprep.subr.bf16.mxu0 0
  %776 = vmatpush2.bf16.msra.mxu0 0
  %777 = vmatprep.subr.bf16.mxu0 0
  %778 = vmatpush2.bf16.msra.mxu0 0
  %779 = vmatprep.subr.bf16.mxu0 0
  %780 = vmatpush2.bf16.msra.mxu0 0
  %781 = vmatprep.subr.bf16.mxu0 0
  %782 = vmatpush2.bf16.msra.mxu0 0
  %783 = vmatprep.subr.bf16.mxu0 0
  %784 = vmatpush2.bf16.msra.mxu0 0
  %785 = vmatprep.subr.bf16.mxu0 0
  %786 = vmatpush2.bf16.msra.mxu0 0
  %787 = vmatprep.subr.bf16.mxu0 0
  %788 = vmatpush2.bf16.msra.mxu0 0
  %789 = vmatprep.subr.bf16.mxu0 0
  %790 = vmatpush2.bf16.msra.mxu0 0
  %791 = vmatprep.mubr.bf16.mxu0 0
  %792 = vmatmul.mubr.bf16.gmra.mxu0 %v757
  %v793 = vpop.f32.mrf.mxu0
  %v794 = vadd.f32 0.0, %v793
  %v795 = vpop.f32.mrf.mxu0
  %v796 = vpop.f32.mrf.mxu0
  %v797 = vpop.f32.mrf.mxu0
  %798 = vdwg.mxu0
  %v799 = vld [vmem:[%s1 + $0x20] sm:$0xff]
  %v800 = vld [vmem:[%s1 + $0x18] sm:$0x1]
  %v801 = vlaneseq
  %v802 = vshrl.u32 %v801, 7
  %v803 = vsub.s32 0, %v802
  %v804 = vrot.slane %v800, %v803
  %v805 = vmul.f32 %v794, %v804
  %v806 = vld [vmem:[%s1 + $0x19] sm:$0x1]
  %v807 = vlaneseq
  %v808 = vshrl.u32 %v807, 7
  %v809 = vsub.s32 0, %v808
  %v810 = vrot.slane %v806, %v809
  %v811 = vmul.f32 %v799, %v810
  %v812 = vadd.f32 %v805, %v811
  %813 = vst [vmem:[%s2] sm:$0xff] %v812
  // Predicated region
  $region10: #{simple_gnn_forward.1} parent=0 // pred_check
    _
  $region11: #{simple_gnn_forward.1} parent=0 // pred_check_branch
    %815 = sbr.rel (0) target = $region13
  $region12: #{simple_gnn_forward.1} parent=0 // pred_region
    _
  $region13: #{simple_gnn_forward.1} parent=0 // pred_fallthru
    _
  // Predicated region
  $region14: #{simple_gnn_forward.1} parent=0 // pred_check
    _
  $region15: #{simple_gnn_forward.1} parent=0 // pred_check_branch
    %817 = sbr.rel (0) target = $region17
  $region16: #{simple_gnn_forward.1} parent=0 // pred_region
    _
  $region17: #{simple_gnn_forward.1} parent=0 // pred_fallthru
    _

</llo_original>
